<compile_context>
chip_gen: v7x
topology: tpu7x:2x2x1
jax: 0.10.0
libtpu: 0.0.40
codegen_flags: <defaults>
</compile_context>

<pallas_src>
from math import ceil

import jax
import jax.numpy as jnp
from jax import lax
from jax.experimental import pallas as pl
from jax.experimental.pallas import tpu as pltpu


def _tpu_budget():
    """Generation-aware VMEM budget / limit and packed lane-width cap."""
    try:
        cap = int(pltpu.get_tpu_info().vmem_capacity_bytes)
    except Exception:
        cap = 64 * 1024 * 1024          # conservative (v7x-sized) fallback
    try:
        kind = jax.devices()[0].device_kind.lower()
    except Exception:
        kind = ""
    lane_cap = 256 if "v5" in kind else 512     # v5 MXU is 128-wide
    budget = int(0.375 * cap)                    # for _pick_k
    vmem_limit = int(0.5 * cap)                  # leaves headroom for Mosaic scratch
    return budget, vmem_limit, lane_cap


def _pick_k(nc, H, W, budget_bytes, lane_cap):
    """Largest divisor K of nc whose packed working set fits the VMEM budget
    and whose packed lane width K*W stays under the MXU-waste cap."""
    best = 1
    for k in range(1, nc + 1):
        if nc % k:
            continue
        kw = k * W
        if k > 1 and kw > lane_cap:
            continue
        slabs = 2 * 3 * H * kw * 4                    # 2 inputs, up to 3-deep buffering
        bands = (4 * H * H + 9 * H * H + kw * kw) * 4  # BH2 + BH3 + BWc, single-buffered
        temps = 24 * H * kw * 4                        # live temporaries + accumulators
        if slabs + bands + temps <= budget_bytes:
            best = k
    return best


def _buffered_spec(shape, index_map, nbuf):
    """BlockSpec with an explicit buffer depth; falls back if the installed
    BlockSpec signature does not take pipeline_mode."""
    if nbuf is None:
        return pl.BlockSpec(shape, index_map)
    try:
        return pl.BlockSpec(shape, index_map, pipeline_mode=pl.Buffered(nbuf))
    except TypeError:
        return pl.BlockSpec(shape, index_map)


def _make_structural_loss_kernel(H, KW, w, thr, steps_per_core):
    inv_area = 1.0 / float((2 * w) ** 2)
    ep = 1e-20
    last = steps_per_core - 1
    f32 = jnp.float32

    def kernel(a_ref, b_ref, bh2_ref, bh3_ref, bw_ref,
               sum_y_ref, sum_x_ref, acc_x_ref, acc_y_ref):
        i = pl.program_id(1)

        @pl.when(i == 0)
        def _():
            acc_x_ref[...] = jnp.zeros_like(acc_x_ref)
            acc_y_ref[...] = jnp.zeros_like(acc_y_ref)

        a = a_ref[0]            # (H, K*W) compact "outputs" slab, K channels on lanes
        b = b_ref[0]            # (H, K*W) compact "labels"  slab
        BH2 = bh2_ref[...]      # (2H, 2H) block-diag(BHc, BHc)        row box band
        BH3 = bh3_ref[...]      # (3H, 3H) block-diag(BHc, BHc, BHc)   row box band
        BW = bw_ref[...]        # (K*W, K*W) block-diag column box band (zero-pad aware)

        # --- local means: one fat left matmul + one right matmul ------------
        ab = jnp.concatenate([a, b], axis=0)                       # (2H, KW)
        mu = jnp.dot(jnp.dot(BH2, ab, preferred_element_type=f32), BW,
                     preferred_element_type=f32) * inv_area         # (2H, KW)
        c1 = a - mu[:H]
        c2 = b - mu[H:]

        # --- local second moments: one fat left matmul + one right matmul ---
        prods = jnp.concatenate([c1 * c1, c2 * c2, c1 * c2], axis=0)  # (3H, KW)
        s = jnp.dot(jnp.dot(BH3, prods, preferred_element_type=f32), BW,
                    preferred_element_type=f32)                       # (3H, KW)
        s11 = jnp.maximum(s[:H], ep)
        s22 = jnp.maximum(s[H:2 * H], ep)
        s12 = s[2 * H:]

        # Split-sqrt via EUP rsqrt: avoids f32 underflow of s11*s22.
        xcorr = s12 * lax.rsqrt(s11) * lax.rsqrt(s22)

        # x = 1 - clamp(xcorr, min=-1); y = x * (x > thr)
        x = 1.0 - jnp.maximum(xcorr, -1.0)
        y = jnp.where(x > thr, x, 0.0)

        # Elementwise VMEM accumulation; reduce once at the final step.
        acc_x_ref[...] += x
        acc_y_ref[...] += y

        @pl.when(i == last)
        def _():
            sum_y_ref[...] = jnp.sum(acc_y_ref[...], keepdims=True)
            sum_x_ref[...] = jnp.sum(acc_x_ref[...], keepdims=True)

    return kernel


def structural_loss(outputs, labels, xcorr_thr, sigma):
    """JAX/Pallas equivalent of StructuralLoss(sigma)(outputs, labels, xcorr_thr).

    Returns (loss_cross_corr, loss_cross_corr_wo_thr) as device scalars.
    (The torch `.item()` host sync on the second value is left to the caller.)
    """
    scale = ceil(sigma / 2)
    B, C, H, W = labels.shape
    if outputs.shape[2:] != labels.shape[2:]:
        outputs = jax.image.resize(
            outputs, (outputs.shape[0], outputs.shape[1], H, W), method="bilinear"
        )

    w = scale
    NC = B * C
    f32 = jnp.float32

    budget, vmem_limit, lane_cap = _tpu_budget()
    K = _pick_k(NC, H, W, budget, lane_cap)
    num_steps = NC // K
    KW = K * W

    # Dual-TensorCore split (v7x): leading parallel axis, per-core accumulators.
    ncore = 2 if (num_steps >= 2 and num_steps % 2 == 0) else 1
    steps_per_core = num_steps // ncore

    def pack(x):
        # (B, C, H, W) -> (num_steps, H, K*W), K channels side-by-side on lanes.
        x = x.astype(f32)
        if K == 1:
            return x.reshape(num_steps, H, W)          # free reshape, no transpose
        x = x.reshape(num_steps, K, H, W)
        return jnp.transpose(x, (0, 2, 1, 3)).reshape(num_steps, H, KW)

    o_p = pack(outputs)
    l_p = pack(labels)

    # --- compact zero-pad-aware 0/1 band matrices (built once) ---------------
    yy = jnp.arange(H)[:, None]
    rr = jnp.arange(H)[None, :]
    BHc = ((rr >= yy - w) & (rr <= yy + w - 1)).astype(f32)          # (H, H)

    cc = jnp.arange(W)[:, None]
    xx = jnp.arange(W)[None, :]
    BWc_seg = ((cc >= xx - w) & (cc <= xx + w - 1)).astype(f32)      # (W, W)

    BH2 = jnp.kron(jnp.eye(2, dtype=f32), BHc)                       # (2H, 2H)
    BH3 = jnp.kron(jnp.eye(3, dtype=f32), BHc)                       # (3H, 3H)
    BWc = jnp.kron(jnp.eye(K, dtype=f32), BWc_seg)                   # (KW, KW)

    kernel = _make_structural_loss_kernel(H, KW, w, float(xcorr_thr), steps_per_core)

    slab_map = lambda c, i, spc=steps_per_core: (c * spc + i, 0, 0)
    const_map = lambda c, i: (0, 0)
    slab_nbuf = 3 if steps_per_core >= 3 else None    # deeper pipelining when useful

    sum_y, sum_x = pl.pallas_call(
        kernel,
        out_shape=(
            jax.ShapeDtypeStruct((ncore, 1, 1), jnp.float32),   # sum of thresholded x
            jax.ShapeDtypeStruct((ncore, 1, 1), jnp.float32),   # sum of x
        ),
        grid_spec=pltpu.PrefetchScalarGridSpec(
            num_scalar_prefetch=0,
            grid=(ncore, steps_per_core),
            in_specs=[
                _buffered_spec((1, H, KW), slab_map, slab_nbuf),     # packed outputs
                _buffered_spec((1, H, KW), slab_map, slab_nbuf),     # packed labels
                _buffered_spec((2 * H, 2 * H), const_map, 1),        # BH2 (constant)
                _buffered_spec((3 * H, 3 * H), const_map, 1),        # BH3 (constant)
                _buffered_spec((KW, KW), const_map, 1),              # BWc (constant)
            ],
            out_specs=[
                pl.BlockSpec((None, 1, 1), lambda c, i: (c, 0, 0)),
                pl.BlockSpec((None, 1, 1), lambda c, i: (c, 0, 0)),
            ],
            scratch_shapes=[
                pltpu.VMEM((H, KW), jnp.float32),   # acc_x
                pltpu.VMEM((H, KW), jnp.float32),   # acc_y
            ],
        ),
        compiler_params=pltpu.CompilerParams(
            dimension_semantics=("parallel", "arbitrary"),
            vmem_limit_bytes=vmem_limit,
        ),
    )(o_p, l_p, BH2, BH3, BWc)

    n_elems = float(NC * H * W)
    loss_cross_corr = jnp.sum(sum_y) / n_elems
    loss_cross_corr_wo_thr = jnp.sum(sum_x) / n_elems
    return loss_cross_corr, loss_cross_corr_wo_thr


if __name__ == "__main__":
    key = jax.random.PRNGKey(0)
    k1, k2 = jax.random.split(key)

    B, C, H, W = 2, 4, 16, 16
    sigma = 2            # -> scale (half-width) w = 1, window 2x2
    xcorr_thr = 0.5

    labels = jax.random.normal(k1, (B, C, H, W), dtype=jnp.float32)
    # Outputs correlated with labels plus a bit of noise.
    outputs = labels + 0.3 * jax.random.normal(k2, (B, C, H, W), dtype=jnp.float32)

    loss, loss_wo_thr = structural_loss(outputs, labels, xcorr_thr, sigma)
    jax.block_until_ready((loss, loss_wo_thr))

    print("KERNEL_OK")
</pallas_src>

<mosaic_0001>
module attributes {stable_mosaic.version = 11 : i64} {
  func.func @kernel(%arg0: i32, %arg1: i32, %arg2: memref<1x16x128xf32, #tpu.memory_space<vmem>>, %arg3: memref<1x16x128xf32, #tpu.memory_space<vmem>>, %arg4: memref<32x32xf32, #tpu.memory_space<vmem>>, %arg5: memref<48x48xf32, #tpu.memory_space<vmem>>, %arg6: memref<128x128xf32, #tpu.memory_space<vmem>>, %arg7: memref<1x1x1xf32, #tpu.memory_space<vmem>>, %arg8: memref<1x1x1xf32, #tpu.memory_space<vmem>>, %arg9: memref<16x128xf32, #tpu.memory_space<vmem>>, %arg10: memref<16x128xf32, #tpu.memory_space<vmem>>) attributes {dimension_semantics = [#tpu.dimension_semantics<parallel>, #tpu.dimension_semantics<arbitrary>], iteration_bounds = array<i64: 1, 1>, scalar_prefetch = 0 : i64, scratch_operands = 2 : i64, tpu.core_type = #tpu.core_type<tc>, window_params = [{transform_indices = @transform_0, window_bounds = array<i64: 1, 16, 128>}, {transform_indices = @transform_1, window_bounds = array<i64: 1, 16, 128>}, {pipeline_mode = #tpu.pipeline_mode<synchronous>, transform_indices = @transform_2, window_bounds = array<i64: 32, 32>}, {pipeline_mode = #tpu.pipeline_mode<synchronous>, transform_indices = @transform_3, window_bounds = array<i64: 48, 48>}, {pipeline_mode = #tpu.pipeline_mode<synchronous>, transform_indices = @transform_4, window_bounds = array<i64: 128, 128>}, {transform_indices = @transform_5, window_bounds = array<i64: 1, 1, 1>}, {transform_indices = @transform_6, window_bounds = array<i64: 1, 1, 1>}]} {
    %c0_i32 = arith.constant 0 : i32
    %0 = arith.cmpi eq, %arg1, %c0_i32 : i32
    %1 = arith.extui %0 : i1 to i32
    %c0_i32_0 = arith.constant 0 : i32
    %2 = arith.cmpi ne, %1, %c0_i32_0 : i32
    scf.if %2 {
      %cst_32 = arith.constant 0.000000e+00 : f32
      %53 = vector.broadcast %cst_32 : f32 to vector<16x128xf32>
      %c0_33 = arith.constant 0 : index
      %c0_34 = arith.constant 0 : index
      %54 = vector.load %arg9[%c0_33, %c0_34] : memref<16x128xf32, #tpu.memory_space<vmem>>, vector<16x128xf32>
      tpu.vector_store %arg9[%c0_33, %c0_34], %53 {strides = array<i32>} : memref<16x128xf32, #tpu.memory_space<vmem>>, vector<16x128xf32>,
      %cst_35 = arith.constant 0.000000e+00 : f32
      %55 = vector.broadcast %cst_35 : f32 to vector<16x128xf32>
      %c0_36 = arith.constant 0 : index
      %c0_37 = arith.constant 0 : index
      %56 = vector.load %arg10[%c0_36, %c0_37] : memref<16x128xf32, #tpu.memory_space<vmem>>, vector<16x128xf32>
      tpu.vector_store %arg10[%c0_36, %c0_37], %55 {strides = array<i32>} : memref<16x128xf32, #tpu.memory_space<vmem>>, vector<16x128xf32>,
    } else {
    }
    %c0 = arith.constant 0 : index
    %c0_1 = arith.constant 0 : index
    %c0_2 = arith.constant 0 : index
    %3 = vector.load %arg2[%c0, %c0_1, %c0_2] : memref<1x16x128xf32, #tpu.memory_space<vmem>>, vector<1x16x128xf32>
    %4 = vector.shape_cast %3 : vector<1x16x128xf32> to vector<16x128xf32>
    %c0_3 = arith.constant 0 : index
    %c0_4 = arith.constant 0 : index
    %c0_5 = arith.constant 0 : index
    %5 = vector.load %arg3[%c0_3, %c0_4, %c0_5] : memref<1x16x128xf32, #tpu.memory_space<vmem>>, vector<1x16x128xf32>
    %6 = vector.shape_cast %5 : vector<1x16x128xf32> to vector<16x128xf32>
    %c0_6 = arith.constant 0 : index
    %c0_7 = arith.constant 0 : index
    %7 = vector.load %arg4[%c0_6, %c0_7] : memref<32x32xf32, #tpu.memory_space<vmem>>, vector<32x32xf32>
    %c0_8 = arith.constant 0 : index
    %c0_9 = arith.constant 0 : index
    %8 = vector.load %arg5[%c0_8, %c0_9] : memref<48x48xf32, #tpu.memory_space<vmem>>, vector<48x48xf32>
    %c0_10 = arith.constant 0 : index
    %c0_11 = arith.constant 0 : index
    %9 = vector.load %arg6[%c0_10, %c0_11] : memref<128x128xf32, #tpu.memory_space<vmem>>, vector<128x128xf32>
    %10 = tpu.concatenate %4, %6 in 0 : vector<16x128xf32>, vector<16x128xf32> -> vector<32x128xf32>
    %cst = arith.constant dense<0.000000e+00> : vector<32x128xf32>
    %11 = tpu.matmul %7, %10, %cst {dimension_numbers = #tpu.dot_dimension_numbers<[1], [0], [0], [1], [0, 0, 1, 1], [], []>} : vector<32x32xf32>, vector<32x128xf32>, vector<32x128xf32> -> vector<32x128xf32>
    %cst_12 = arith.constant dense<0.000000e+00> : vector<32x128xf32>
    %12 = tpu.matmul %11, %9, %cst_12 {dimension_numbers = #tpu.dot_dimension_numbers<[1], [0], [0], [1], [0, 0, 1, 1], [], []>} : vector<32x128xf32>, vector<128x128xf32>, vector<32x128xf32> -> vector<32x128xf32>
    %cst_13 = arith.constant 2.500000e-01 : f32
    %13 = vector.broadcast %cst_13 : f32 to vector<32x128xf32>
    %14 = arith.mulf %12, %13 : vector<32x128xf32>
    %15 = vector.extract_strided_slice %14 {offsets = [0, 0], sizes = [16, 128], strides = [1, 1]} : vector<32x128xf32> to vector<16x128xf32>
    %16 = arith.subf %4, %15 : vector<16x128xf32>
    %17 = vector.extract_strided_slice %14 {offsets = [16, 0], sizes = [16, 128], strides = [1, 1]} : vector<32x128xf32> to vector<16x128xf32>
    %18 = arith.subf %6, %17 : vector<16x128xf32>
    %19 = arith.mulf %16, %16 : vector<16x128xf32>
    %20 = arith.mulf %18, %18 : vector<16x128xf32>
    %21 = arith.mulf %16, %18 : vector<16x128xf32>
    %22 = tpu.concatenate %19, %20, %21 in 0 : vector<16x128xf32>, vector<16x128xf32>, vector<16x128xf32> -> vector<48x128xf32>
    %cst_14 = arith.constant dense<0.000000e+00> : vector<48x128xf32>
    %23 = tpu.matmul %8, %22, %cst_14 {dimension_numbers = #tpu.dot_dimension_numbers<[1], [0], [0], [1], [0, 0, 1, 1], [], []>} : vector<48x48xf32>, vector<48x128xf32>, vector<48x128xf32> -> vector<48x128xf32>
    %cst_15 = arith.constant dense<0.000000e+00> : vector<48x128xf32>
    %24 = tpu.matmul %23, %9, %cst_15 {dimension_numbers = #tpu.dot_dimension_numbers<[1], [0], [0], [1], [0, 0, 1, 1], [], []>} : vector<48x128xf32>, vector<128x128xf32>, vector<48x128xf32> -> vector<48x128xf32>
    %25 = vector.extract_strided_slice %24 {offsets = [0, 0], sizes = [16, 128], strides = [1, 1]} : vector<48x128xf32> to vector<16x128xf32>
    %cst_16 = arith.constant 9.99999968E-21 : f32
    %26 = vector.broadcast %cst_16 : f32 to vector<16x128xf32>
    %27 = arith.maximumf %25, %26 : vector<16x128xf32>
    %28 = vector.extract_strided_slice %24 {offsets = [16, 0], sizes = [16, 128], strides = [1, 1]} : vector<48x128xf32> to vector<16x128xf32>
    %cst_17 = arith.constant 9.99999968E-21 : f32
    %29 = vector.broadcast %cst_17 : f32 to vector<16x128xf32>
    %30 = arith.maximumf %28, %29 : vector<16x128xf32>
    %31 = vector.extract_strided_slice %24 {offsets = [32, 0], sizes = [16, 128], strides = [1, 1]} : vector<48x128xf32> to vector<16x128xf32>
    %32 = math.rsqrt %27 : vector<16x128xf32>
    %33 = arith.mulf %31, %32 : vector<16x128xf32>
    %34 = math.rsqrt %30 : vector<16x128xf32>
    %35 = arith.mulf %33, %34 : vector<16x128xf32>
    %cst_18 = arith.constant -1.000000e+00 : f32
    %36 = vector.broadcast %cst_18 : f32 to vector<16x128xf32>
    %37 = arith.maximumf %35, %36 : vector<16x128xf32>
    %cst_19 = arith.constant 1.000000e+00 : f32
    %38 = vector.broadcast %cst_19 : f32 to vector<16x128xf32>
    %39 = arith.subf %38, %37 : vector<16x128xf32>
    %cst_20 = arith.constant 5.000000e-01 : f32
    %40 = vector.broadcast %cst_20 : f32 to vector<16x128xf32>
    %41 = arith.cmpf ogt, %39, %40 : vector<16x128xf32>
    %cst_21 = arith.constant 0.000000e+00 : f32
    %42 = vector.broadcast %cst_21 : f32 to vector<16x128xf32>
    %43 = arith.select %41, %39, %42 : vector<16x128xi1>, vector<16x128xf32>
    %c0_22 = arith.constant 0 : index
    %c0_23 = arith.constant 0 : index
    %44 = vector.load %arg9[%c0_22, %c0_23] : memref<16x128xf32, #tpu.memory_space<vmem>>, vector<16x128xf32>
    %45 = arith.addf %44, %39 : vector<16x128xf32>
    %c0_24 = arith.constant 0 : index
    %c0_25 = arith.constant 0 : index
    %46 = vector.load %arg9[%c0_24, %c0_25] : memref<16x128xf32, #tpu.memory_space<vmem>>, vector<16x128xf32>
    tpu.vector_store %arg9[%c0_24, %c0_25], %45 {strides = array<i32>} : memref<16x128xf32, #tpu.memory_space<vmem>>, vector<16x128xf32>,
    %c0_26 = arith.constant 0 : index
    %c0_27 = arith.constant 0 : index
    %47 = vector.load %arg10[%c0_26, %c0_27] : memref<16x128xf32, #tpu.memory_space<vmem>>, vector<16x128xf32>
    %48 = arith.addf %47, %43 : vector<16x128xf32>
    %c0_28 = arith.constant 0 : index
    %c0_29 = arith.constant 0 : index
    %49 = vector.load %arg10[%c0_28, %c0_29] : memref<16x128xf32, #tpu.memory_space<vmem>>, vector<16x128xf32>
    tpu.vector_store %arg10[%c0_28, %c0_29], %48 {strides = array<i32>} : memref<16x128xf32, #tpu.memory_space<vmem>>, vector<16x128xf32>,
    %c0_i32_30 = arith.constant 0 : i32
    %50 = arith.cmpi eq, %arg1, %c0_i32_30 : i32
    %51 = arith.extui %50 : i1 to i32
    %c0_i32_31 = arith.constant 0 : i32
    %52 = arith.cmpi ne, %51, %c0_i32_31 : i32
    scf.if %52 {
      %c0_32 = arith.constant 0 : index
      %c0_33 = arith.constant 0 : index
      %53 = vector.load %arg10[%c0_32, %c0_33] : memref<16x128xf32, #tpu.memory_space<vmem>>, vector<16x128xf32>
      %54 = vector.shape_cast %53 : vector<16x128xf32> to vector<1x16x128xf32>
      %cst_34 = arith.constant dense<0.000000e+00> : vector<1xf32>
      %55 = vector.multi_reduction <add>, %54, %cst_34 [1, 2] : vector<1x16x128xf32> to vector<1xf32>
      %56 = vector.shape_cast %55 : vector<1xf32> to vector<1x1x1xf32>
      %57 = vector.extract %56[0, 0, 0] : f32 from vector<1x1x1xf32>
      %58 = vector.broadcast %57 : f32 to vector<1x1xf32>
      %c0_35 = arith.constant 0 : index
      %c0_36 = arith.constant 0 : index
      %c0_37 = arith.constant 0 : index
      %59 = vector.load %arg7[%c0_35, %c0_36, %c0_37] : memref<1x1x1xf32, #tpu.memory_space<vmem>>, vector<1x1x1xf32>
      %60 = vector.shape_cast %59 : vector<1x1x1xf32> to vector<1x1xf32>
      %61 = vector.shape_cast %58 : vector<1x1xf32> to vector<1x1x1xf32>
      tpu.vector_store %arg7[%c0_35, %c0_36, %c0_37], %61 {strides = array<i32>} : memref<1x1x1xf32, #tpu.memory_space<vmem>>, vector<1x1x1xf32>,
      %c0_38 = arith.constant 0 : index
      %c0_39 = arith.constant 0 : index
      %62 = vector.load %arg9[%c0_38, %c0_39] : memref<16x128xf32, #tpu.memory_space<vmem>>, vector<16x128xf32>
      %63 = vector.shape_cast %62 : vector<16x128xf32> to vector<1x16x128xf32>
      %cst_40 = arith.constant dense<0.000000e+00> : vector<1xf32>
      %64 = vector.multi_reduction <add>, %63, %cst_40 [1, 2] : vector<1x16x128xf32> to vector<1xf32>
      %65 = vector.shape_cast %64 : vector<1xf32> to vector<1x1x1xf32>
      %66 = vector.extract %65[0, 0, 0] : f32 from vector<1x1x1xf32>
      %67 = vector.broadcast %66 : f32 to vector<1x1xf32>
      %c0_41 = arith.constant 0 : index
      %c0_42 = arith.constant 0 : index
      %c0_43 = arith.constant 0 : index
      %68 = vector.load %arg8[%c0_41, %c0_42, %c0_43] : memref<1x1x1xf32, #tpu.memory_space<vmem>>, vector<1x1x1xf32>
      %69 = vector.shape_cast %68 : vector<1x1x1xf32> to vector<1x1xf32>
      %70 = vector.shape_cast %67 : vector<1x1xf32> to vector<1x1x1xf32>
      tpu.vector_store %arg8[%c0_41, %c0_42, %c0_43], %70 {strides = array<i32>} : memref<1x1x1xf32, #tpu.memory_space<vmem>>, vector<1x1x1xf32>,
    } else {
    }
    return
  }
  func.func @transform_0(%arg0: i32, %arg1: i32) -> (i32, i32, i32) {
    %c1_i32 = arith.constant 1 : i32
    %0 = arith.muli %arg0, %c1_i32 : i32
    %1 = arith.addi %0, %arg1 : i32
    %c0_i32 = arith.constant 0 : i32
    %c0_i32_0 = arith.constant 0 : i32
    %c0_i32_1 = arith.constant 0 : i32
    return %1, %c0_i32, %c0_i32_0 : i32, i32, i32
  }
  func.func @transform_1(%arg0: i32, %arg1: i32) -> (i32, i32, i32) {
    %c1_i32 = arith.constant 1 : i32
    %0 = arith.muli %arg0, %c1_i32 : i32
    %1 = arith.addi %0, %arg1 : i32
    %c0_i32 = arith.constant 0 : i32
    %c0_i32_0 = arith.constant 0 : i32
    %c0_i32_1 = arith.constant 0 : i32
    return %1, %c0_i32, %c0_i32_0 : i32, i32, i32
  }
  func.func @transform_2(%arg0: i32, %arg1: i32) -> (i32, i32) {
    %c0_i32 = arith.constant 0 : i32
    %c0_i32_0 = arith.constant 0 : i32
    %c0_i32_1 = arith.constant 0 : i32
    return %c0_i32, %c0_i32_0 : i32, i32
  }
  func.func @transform_3(%arg0: i32, %arg1: i32) -> (i32, i32) {
    %c0_i32 = arith.constant 0 : i32
    %c0_i32_0 = arith.constant 0 : i32
    %c0_i32_1 = arith.constant 0 : i32
    return %c0_i32, %c0_i32_0 : i32, i32
  }
  func.func @transform_4(%arg0: i32, %arg1: i32) -> (i32, i32) {
    %c0_i32 = arith.constant 0 : i32
    %c0_i32_0 = arith.constant 0 : i32
    %c0_i32_1 = arith.constant 0 : i32
    return %c0_i32, %c0_i32_0 : i32, i32
  }
  func.func @transform_5(%arg0: i32, %arg1: i32) -> (i32, i32, i32) {
    %c0_i32 = arith.constant 0 : i32
    %c0_i32_0 = arith.constant 0 : i32
    %c0_i32_1 = arith.constant 0 : i32
    return %arg0, %c0_i32, %c0_i32_0 : i32, i32, i32
  }
  func.func @transform_6(%arg0: i32, %arg1: i32) -> (i32, i32, i32) {
    %c0_i32 = arith.constant 0 : i32
    %c0_i32_0 = arith.constant 0 : i32
    %c0_i32_1 = arith.constant 0 : i32
    return %arg0, %c0_i32, %c0_i32_0 : i32, i32, i32
  }
}

</mosaic_0001>

<llo_original>
// kernel: tpu_custom_call.1
$region0: #{tpu_custom_call.1}
  #allocation0 [shape = 'u32[]', space=smem, size = 0x4, offset = 0x4, fixed_abs, tag = 'smem constant byte address 0x4 - core index']
  #allocation1 [shape = 'u32[144,128]{1,0:T(1,128)}', space=vmem, size = 0x12000, scoped, tag = 'internal scratch']
  #allocation2 [shape = 'f32[16,128]{1,0:T(8,128)}', space=vmem, size = 0x2000, scoped, tag = 'scratch operand']
  #allocation3 [shape = 'f32[16,128]{1,0:T(8,128)}', space=vmem, size = 0x2000, scoped, tag = 'scratch operand']
  %s0 = inlined_call_operand.hbm [shape: f32[1,16,128], index: 0, kind: input, shape index: {}]
  %s1 = inlined_call_operand.hbm [shape: f32[1,16,128], index: 1, kind: input, shape index: {}]
  %s2 = inlined_call_operand.hbm [shape: f32[32,32], index: 2, kind: input, shape index: {}]
  %s3 = inlined_call_operand.hbm [shape: f32[48,48], index: 3, kind: input, shape index: {}]
  %s4 = inlined_call_operand.hbm [shape: f32[128,128], index: 4, kind: input, shape index: {}]
  %s5 = inlined_call_operand.hbm [shape: f32[1,1,1], index: 5, kind: output, shape index: {0}]
  %s6 = inlined_call_operand.hbm [shape: f32[1,1,1], index: 6, kind: output, shape index: {1}]
  %7 = xla_tuple %s5, %s6
  %s8 = sld [smem:[#allocation0]]
  $region66: #{tpu_custom_call.1} parent=0
    _
  %s10 = ssub.s32 1, %s8
  %s11 = scalar_select 0, %s10, %s8
  $region1: #{tpu_custom_call.1} parent=0
    #allocation4 [shape = 'u8[8192]{0}', space=vmem, size = 0x2000, scoped, tag = 'input window, operand 0, single buffered']
    #allocation5 [shape = 's32[1]{0}', space=sflag, size = 0x4, scoped, tag = 'scoped memory for tpu_custom_call.1']
    #allocation6 [shape = 's32[1]{0}', space=sflag, size = 0x4, scoped, tag = 'scoped memory for tpu_custom_call.1']
    #allocation7 [shape = 'u8[8192]{0}', space=vmem, size = 0x2000, scoped, tag = 'input window, operand 1, single buffered']
    #allocation8 [shape = 's32[1]{0}', space=sflag, size = 0x4, scoped, tag = 'scoped memory for tpu_custom_call.1']
    #allocation9 [shape = 'u8[16384]{0}', space=vmem, size = 0x4000, scoped, tag = 'input window, operand 2, single buffered']
    #allocation10 [shape = 'u8[24576]{0}', space=vmem, size = 0x6000, scoped, tag = 'input window, operand 3, single buffered']
    #allocation11 [shape = 's32[1]{0}', space=sflag, size = 0x4, scoped, tag = 'scoped memory for tpu_custom_call.1']
    #allocation12 [shape = 'u8[65536]{0}', space=vmem, size = 0x10000, scoped, tag = 'input window, operand 4, single buffered']
    #allocation13 [shape = 'u8[512]{0}', space=vmem, size = 0x400, scoped, tag = 'output window, operand 0, single buffered']
    #allocation14 [shape = 'u8[512]{0}', space=vmem, size = 0x400, scoped, tag = 'output window, operand 1, single buffered']
    #allocation15 [shape = 's32[1]{0}', space=sflag, size = 0x4, scoped, tag = 'scoped memory for tpu_custom_call.1']
    %12 = vsyncpa [#allocation5], 0
    %13 = vsyncpa [#allocation8], 0
    %14 = vsyncpa [#allocation11], 0
    %15 = vsyncpa [#allocation6], 0
    %16 = vsyncpa [#allocation15], 0
    // Predicated region
    $region2: #{tpu_custom_call.1} parent=1 // pred_check
      _
    $region3: #{tpu_custom_call.1} parent=1 // pred_check_branch
      %18 = sbr.rel (0) target = $region5
    $region4: #{tpu_custom_call.1} parent=1 // pred_region
      %s19 = sadd.s32 0, 0
      %s21 = ssub.s32 256, 256
      %22 = vsyncadd [#allocation5], %s21
      %s23 = smul.addr %s19, 2
      %s24 = smul.addr %s23, 128
      %s25 = scalar_lea.hbm %s0, %s24
      %s26 = sshll.u32 [#allocation4], 4
      %s27 = int_to_ptr.vmem [resolvable:$true] %s26
      %32 = dma.hbm_to_vmem [thread:$0]  %s25, 256, %s27, [#allocation5], 128, 128, 8
    $region5: #{tpu_custom_call.1} parent=1 // pred_fallthru
      _
    // Predicated region
    $region6: #{tpu_custom_call.1} parent=1 // pred_check
      _
    $region7: #{tpu_custom_call.1} parent=1 // pred_check_branch
      %34 = sbr.rel (0) target = $region9
    $region8: #{tpu_custom_call.1} parent=1 // pred_region
      %s35 = sadd.s32 0, 0
      %s37 = ssub.s32 256, 256
      %38 = vsyncadd [#allocation8], %s37
      %s39 = smul.addr %s35, 2
      %s40 = smul.addr %s39, 128
      %s41 = scalar_lea.hbm %s1, %s40
      %s42 = sshll.u32 [#allocation7], 4
      %s43 = int_to_ptr.vmem [resolvable:$true] %s42
      %48 = dma.hbm_to_vmem [thread:$0]  %s41, 256, %s43, [#allocation8], 128, 128, 8
    $region9: #{tpu_custom_call.1} parent=1 // pred_fallthru
      _
    // Predicated region
    $region10: #{tpu_custom_call.1} parent=1 // pred_check
      _
    $region11: #{tpu_custom_call.1} parent=1 // pred_check_branch
      %50 = sbr.rel (0) target = $region13
    $region12: #{tpu_custom_call.1} parent=1 // pred_region
      %s52 = ssub.s32 512, 512
      %53 = vsyncadd [#allocation8], %s52
      %s54 = sshll.u32 [#allocation9], 4
      %s55 = int_to_ptr.vmem [resolvable:$true] %s54
      %60 = dma.hbm_to_vmem [thread:$0]  %s2, 512, %s55, [#allocation8], 128, 128, 8
    $region13: #{tpu_custom_call.1} parent=1 // pred_fallthru
      _
    // Predicated region
    $region14: #{tpu_custom_call.1} parent=1 // pred_check
      _
    $region15: #{tpu_custom_call.1} parent=1 // pred_check_branch
      %62 = sbr.rel (0) target = $region17
    $region16: #{tpu_custom_call.1} parent=1 // pred_region
      %s64 = ssub.s32 768, 768
      %65 = vsyncadd [#allocation11], %s64
      %s66 = sshll.u32 [#allocation10], 4
      %s67 = int_to_ptr.vmem [resolvable:$true] %s66
      %72 = dma.hbm_to_vmem [thread:$0]  %s3, 768, %s67, [#allocation11], 128, 128, 8
    $region17: #{tpu_custom_call.1} parent=1 // pred_fallthru
      _
    // Predicated region
    $region18: #{tpu_custom_call.1} parent=1 // pred_check
      _
    $region19: #{tpu_custom_call.1} parent=1 // pred_check_branch
      %74 = sbr.rel (0) target = $region21
    $region20: #{tpu_custom_call.1} parent=1 // pred_region
      %s76 = ssub.s32 2048, 2048
      %77 = vsyncadd [#allocation11], %s76
      %s78 = sshll.u32 [#allocation12], 4
      %s79 = int_to_ptr.vmem [resolvable:$true] %s78
      %84 = dma.hbm_to_vmem [thread:$0]  %s4, 2048, %s79, [#allocation11], 128, 128, 8
    $region21: #{tpu_custom_call.1} parent=1 // pred_fallthru
      _
    // Predicated region
    $region22: #{tpu_custom_call.1} parent=1 // pred_check
      _
    $region23: #{tpu_custom_call.1} parent=1 // pred_check_branch
      %86 = sbr.rel (0) target = $region25
    $region24: #{tpu_custom_call.1} parent=1 // pred_region
      %87 = dma.done [#allocation5], 256
    $region25: #{tpu_custom_call.1} parent=1 // pred_fallthru
      _
    // Predicated region
    $region26: #{tpu_custom_call.1} parent=1 // pred_check
      _
    $region27: #{tpu_custom_call.1} parent=1 // pred_check_branch
      %89 = sbr.rel (0) target = $region29
    $region28: #{tpu_custom_call.1} parent=1 // pred_region
      %90 = dma.done [#allocation8], 256
    $region29: #{tpu_custom_call.1} parent=1 // pred_fallthru
      _
    // Predicated region
    $region30: #{tpu_custom_call.1} parent=1 // pred_check
      _
    $region31: #{tpu_custom_call.1} parent=1 // pred_check_branch
      %92 = sbr.rel (0) target = $region33
    $region32: #{tpu_custom_call.1} parent=1 // pred_region
      %93 = dma.done [#allocation8], 512
    $region33: #{tpu_custom_call.1} parent=1 // pred_fallthru
      _
    // Predicated region
    $region34: #{tpu_custom_call.1} parent=1 // pred_check
      _
    $region35: #{tpu_custom_call.1} parent=1 // pred_check_branch
      %95 = sbr.rel (0) target = $region37
    $region36: #{tpu_custom_call.1} parent=1 // pred_region
      %96 = dma.done [#allocation11], 768
    $region37: #{tpu_custom_call.1} parent=1 // pred_fallthru
      _
    // Predicated region
    $region38: #{tpu_custom_call.1} parent=1 // pred_check
      _
    $region39: #{tpu_custom_call.1} parent=1 // pred_check_branch
      %98 = sbr.rel (0) target = $region41
    $region40: #{tpu_custom_call.1} parent=1 // pred_region
      %99 = dma.done [#allocation11], 2048
    $region41: #{tpu_custom_call.1} parent=1 // pred_fallthru
      _
    %s100 = sadd.s32 0, 0
    %s101 = sadd.s32 0, 0
    %p102 = scmp.eq.s32.totalorder 0, 0
    // Predicated region
    $region42: #{tpu_custom_call.1} parent=1 // pred_check
      %p103 = pneg %p102
    $region43: #{tpu_custom_call.1} parent=1 // pred_check_branch
      %105 = sbr.rel (%p103) target = $region45
    $region44: #{tpu_custom_call.1} parent=1 // pred_region
      %106 = vst [vmem:[#allocation2] sm:$0xff] 0.0
      %107 = vst [vmem:[#allocation2 + $0x8] sm:$0xff] 0.0
      %108 = vst [vmem:[#allocation3] sm:$0xff] 0.0
      %109 = vst [vmem:[#allocation3 + $0x8] sm:$0xff] 0.0
    $region45: #{tpu_custom_call.1} parent=1 // pred_fallthru
      _
    %v110 = vld [vmem:[#allocation4] sm:$0xff]
    %v111 = vld [vmem:[#allocation4 + $0x8] sm:$0xff]
    %v112 = vld [vmem:[#allocation7] sm:$0xff]
    %v113 = vld [vmem:[#allocation7 + $0x8] sm:$0xff]
    %v114 = vld [vmem:[#allocation9] sm:$0xff]
    %v115 = vld [vmem:[#allocation9 + $0x8] sm:$0xff]
    %v116 = vld [vmem:[#allocation9 + $0x10] sm:$0xff]
    %v117 = vld [vmem:[#allocation9 + $0x18] sm:$0xff]
    %v118 = vld [vmem:[#allocation10] sm:$0xff]
    %v119 = vld [vmem:[#allocation10 + $0x8] sm:$0xff]
    %v120 = vld [vmem:[#allocation10 + $0x10] sm:$0xff]
    %v121 = vld [vmem:[#allocation10 + $0x18] sm:$0xff]
    %v122 = vld [vmem:[#allocation10 + $0x20] sm:$0xff]
    %v123 = vld [vmem:[#allocation10 + $0x28] sm:$0xff]
    %v124 = vld [vmem:[#allocation12] sm:$0xff]
    %v125 = vld [vmem:[#allocation12 + $0x8] sm:$0xff]
    %v126 = vld [vmem:[#allocation12 + $0x10] sm:$0xff]
    %v127 = vld [vmem:[#allocation12 + $0x18] sm:$0xff]
    %v128 = vld [vmem:[#allocation12 + $0x20] sm:$0xff]
    %v129 = vld [vmem:[#allocation12 + $0x28] sm:$0xff]
    %v130 = vld [vmem:[#allocation12 + $0x30] sm:$0xff]
    %v131 = vld [vmem:[#allocation12 + $0x38] sm:$0xff]
    %v132 = vld [vmem:[#allocation12 + $0x40] sm:$0xff]
    %v133 = vld [vmem:[#allocation12 + $0x48] sm:$0xff]
    %v134 = vld [vmem:[#allocation12 + $0x50] sm:$0xff]
    %v135 = vld [vmem:[#allocation12 + $0x58] sm:$0xff]
    %v136 = vld [vmem:[#allocation12 + $0x60] sm:$0xff]
    %v137 = vld [vmem:[#allocation12 + $0x68] sm:$0xff]
    %v138 = vld [vmem:[#allocation12 + $0x70] sm:$0xff]
    %v139 = vld [vmem:[#allocation12 + $0x78] sm:$0xff]
    %vm140 = vcmask 261120
    %v142 = vsel %vm140, %v114, 0
    %v145 = vsel %vm140, %v115, 0
    %v148 = vsel %vm140, %v116, 0
    %v151 = vsel %vm140, %v117, 0
    %153 = vmatprep.subr.mxu0 0.0
    %154 = vmatpush1.msra.mxu0 %v110
    %155 = vmatprep.subr.mxu0 0.0
    %156 = vmatpush1.msra.mxu0 %v111
    %157 = vmatprep.subr.mxu0 0.0
    %158 = vmatpush1.msra.mxu0 %v112
    %159 = vmatprep.subr.mxu0 0.0
    %160 = vmatpush1.msra.mxu0 %v113
    %161 = vmatprep.subr.mxu0 0.0
    %162 = vmatpush1.msra.mxu0 0.0
    %163 = vmatprep.subr.mxu0 0.0
    %164 = vmatpush1.msra.mxu0 0.0
    %165 = vmatprep.subr.mxu0 0.0
    %166 = vmatpush1.msra.mxu0 0.0
    %167 = vmatprep.subr.mxu0 0.0
    %168 = vmatpush1.msra.mxu0 0.0
    %169 = vmatprep.subr.mxu0 0.0
    %170 = vmatpush1.msra.mxu0 0.0
    %171 = vmatprep.subr.mxu0 0.0
    %172 = vmatpush1.msra.mxu0 0.0
    %173 = vmatprep.subr.mxu0 0.0
    %174 = vmatpush1.msra.mxu0 0.0
    %175 = vmatprep.subr.mxu0 0.0
    %176 = vmatpush1.msra.mxu0 0.0
    %177 = vmatprep.subr.mxu0 0.0
    %178 = vmatpush1.msra.mxu0 0.0
    %179 = vmatprep.subr.mxu0 0.0
    %180 = vmatpush1.msra.mxu0 0.0
    %181 = vmatprep.subr.mxu0 0.0
    %182 = vmatpush1.msra.mxu0 0.0
    %183 = vmatprep.subr.mxu0 0.0
    %184 = vmatpush1.msra.mxu0 0.0
    %185 = vmatprep.subr.mxu0 0.0
    %186 = vmatpush1.msra.mxu0 0.0
    %187 = vmatprep.subr.mxu0 0.0
    %188 = vmatpush1.msra.mxu0 0.0
    %189 = vmatprep.subr.mxu0 0.0
    %190 = vmatpush1.msra.mxu0 0.0
    %191 = vmatprep.subr.mxu0 0.0
    %192 = vmatpush1.msra.mxu0 0.0
    %193 = vmatprep.subr.mxu0 0.0
    %194 = vmatpush1.msra.mxu0 0.0
    %195 = vmatprep.subr.mxu0 0.0
    %196 = vmatpush1.msra.mxu0 0.0
    %197 = vmatprep.subr.mxu0 0.0
    %198 = vmatpush1.msra.mxu0 0.0
    %199 = vmatprep.subr.mxu0 0.0
    %200 = vmatpush1.msra.mxu0 0.0
    %201 = vmatprep.subr.mxu0 0.0
    %202 = vmatpush1.msra.mxu0 0.0
    %203 = vmatprep.subr.mxu0 0.0
    %204 = vmatpush1.msra.mxu0 0.0
    %205 = vmatprep.subr.mxu0 0.0
    %206 = vmatpush1.msra.mxu0 0.0
    %207 = vmatprep.subr.mxu0 0.0
    %208 = vmatpush1.msra.mxu0 0.0
    %209 = vmatprep.subr.mxu0 0.0
    %210 = vmatpush1.msra.mxu0 0.0
    %211 = vmatprep.subr.mxu0 0.0
    %212 = vmatpush1.msra.mxu0 0.0
    %213 = vmatprep.subr.mxu0 0.0
    %214 = vmatpush1.msra.mxu0 0.0
    %215 = vmatprep.subr.mxu0 0.0
    %216 = vmatpush1.msra.mxu0 0.0
    %217 = vmatprep.mubr.f32.mxu0 0.0
    %218 = vmatmul.mubr.f32.gmra.mrb[0].mxu0 %v142
    %v219 = vpop.f32.mrb[0].mxu0
    %v220 = vadd.f32 0.0, %v219
    %v221 = vpop.f32.mrb[0].mxu0
    %222 = vmatprep.mubr.f32.mxu0 0.0
    %223 = vmatmul.mubr.f32.gmra.mrb[0].mxu0 %v145
    %v224 = vpop.f32.mrb[0].mxu0
    %v225 = vadd.f32 0.0, %v224
    %v226 = vpop.f32.mrb[0].mxu0
    %227 = vmatprep.mubr.f32.mxu0 0.0
    %228 = vmatmul.mubr.f32.gmra.mrb[0].mxu0 %v148
    %v229 = vpop.f32.mrb[0].mxu0
    %v230 = vadd.f32 0.0, %v229
    %v231 = vpop.f32.mrb[0].mxu0
    %232 = vmatprep.mubr.f32.mxu0 0.0
    %233 = vmatmul.mubr.f32.gmra.mrb[0].mxu0 %v151
    %v234 = vpop.f32.mrb[0].mxu0
    %v235 = vadd.f32 0.0, %v234
    %v236 = vpop.f32.mrb[0].mxu0
    %237 = vdwg.mxu0
    %238 = vmatprep.subr.mxu0 0.0
    %239 = vmatpush1.msra.mxu0 %v124
    %240 = vmatprep.subr.mxu0 0.0
    %241 = vmatpush1.msra.mxu0 %v125
    %242 = vmatprep.subr.mxu0 0.0
    %243 = vmatpush1.msra.mxu0 %v126
    %244 = vmatprep.subr.mxu0 0.0
    %245 = vmatpush1.msra.mxu0 %v127
    %246 = vmatprep.subr.mxu0 0.0
    %247 = vmatpush1.msra.mxu0 %v128
    %248 = vmatprep.subr.mxu0 0.0
    %249 = vmatpush1.msra.mxu0 %v129
    %250 = vmatprep.subr.mxu0 0.0
    %251 = vmatpush1.msra.mxu0 %v130
    %252 = vmatprep.subr.mxu0 0.0
    %253 = vmatpush1.msra.mxu0 %v131
    %254 = vmatprep.subr.mxu0 0.0
    %255 = vmatpush1.msra.mxu0 %v132
    %256 = vmatprep.subr.mxu0 0.0
    %257 = vmatpush1.msra.mxu0 %v133
    %258 = vmatprep.subr.mxu0 0.0
    %259 = vmatpush1.msra.mxu0 %v134
    %260 = vmatprep.subr.mxu0 0.0
    %261 = vmatpush1.msra.mxu0 %v135
    %262 = vmatprep.subr.mxu0 0.0
    %263 = vmatpush1.msra.mxu0 %v136
    %264 = vmatprep.subr.mxu0 0.0
    %265 = vmatpush1.msra.mxu0 %v137
    %266 = vmatprep.subr.mxu0 0.0
    %267 = vmatpush1.msra.mxu0 %v138
    %268 = vmatprep.subr.mxu0 0.0
    %269 = vmatpush1.msra.mxu0 %v139
    %270 = vmatprep.subr.mxu0 0.0
    %271 = vmatpush1.msra.mxu0 0.0
    %272 = vmatprep.subr.mxu0 0.0
    %273 = vmatpush1.msra.mxu0 0.0
    %274 = vmatprep.subr.mxu0 0.0
    %275 = vmatpush1.msra.mxu0 0.0
    %276 = vmatprep.subr.mxu0 0.0
    %277 = vmatpush1.msra.mxu0 0.0
    %278 = vmatprep.subr.mxu0 0.0
    %279 = vmatpush1.msra.mxu0 0.0
    %280 = vmatprep.subr.mxu0 0.0
    %281 = vmatpush1.msra.mxu0 0.0
    %282 = vmatprep.subr.mxu0 0.0
    %283 = vmatpush1.msra.mxu0 0.0
    %284 = vmatprep.subr.mxu0 0.0
    %285 = vmatpush1.msra.mxu0 0.0
    %286 = vmatprep.subr.mxu0 0.0
    %287 = vmatpush1.msra.mxu0 0.0
    %288 = vmatprep.subr.mxu0 0.0
    %289 = vmatpush1.msra.mxu0 0.0
    %290 = vmatprep.subr.mxu0 0.0
    %291 = vmatpush1.msra.mxu0 0.0
    %292 = vmatprep.subr.mxu0 0.0
    %293 = vmatpush1.msra.mxu0 0.0
    %294 = vmatprep.subr.mxu0 0.0
    %295 = vmatpush1.msra.mxu0 0.0
    %296 = vmatprep.subr.mxu0 0.0
    %297 = vmatpush1.msra.mxu0 0.0
    %298 = vmatprep.subr.mxu0 0.0
    %299 = vmatpush1.msra.mxu0 0.0
    %300 = vmatprep.subr.mxu0 0.0
    %301 = vmatpush1.msra.mxu0 0.0
    %302 = vmatprep.mubr.f32.mxu0 0.0
    %303 = vmatmul.mubr.f32.gmra.mrb[0].mxu0 %v220
    %v304 = vpop.f32.mrb[0].mxu0
    %v305 = vadd.f32 0.0, %v304
    %v306 = vpop.f32.mrb[0].mxu0
    %307 = vmatprep.mubr.f32.mxu0 0.0
    %308 = vmatmul.mubr.f32.gmra.mrb[0].mxu0 %v225
    %v309 = vpop.f32.mrb[0].mxu0
    %v310 = vadd.f32 0.0, %v309
    %v311 = vpop.f32.mrb[0].mxu0
    %312 = vmatprep.mubr.f32.mxu0 0.0
    %313 = vmatmul.mubr.f32.gmra.mrb[0].mxu0 %v230
    %v314 = vpop.f32.mrb[0].mxu0
    %v315 = vadd.f32 0.0, %v314
    %v316 = vpop.f32.mrb[0].mxu0
    %317 = vmatprep.mubr.f32.mxu0 0.0
    %318 = vmatmul.mubr.f32.gmra.mrb[0].mxu0 %v235
    %v319 = vpop.f32.mrb[0].mxu0
    %v320 = vadd.f32 0.0, %v319
    %v321 = vpop.f32.mrb[0].mxu0
    %322 = vdwg.mxu0
    %v323 = vmul.f32 %v305, 0.25
    %v324 = vmul.f32 %v310, 0.25
    %v325 = vmul.f32 %v315, 0.25
    %v326 = vmul.f32 %v320, 0.25
    %v327 = vsub.f32 %v110, %v323
    %v328 = vsub.f32 %v111, %v324
    %v329 = vsub.f32 %v112, %v325
    %v330 = vsub.f32 %v113, %v326
    %v331 = vmul.f32 %v327, %v327
    %v332 = vmul.f32 %v328, %v328
    %v333 = vmul.f32 %v329, %v329
    %v334 = vmul.f32 %v330, %v330
    %v335 = vmul.f32 %v327, %v329
    %v336 = vmul.f32 %v328, %v330
    %vm337 = vcmask 392192
    %v339 = vsel %vm337, %v118, 0
    %v342 = vsel %vm337, %v119, 0
    %v345 = vsel %vm337, %v120, 0
    %v348 = vsel %vm337, %v121, 0
    %v351 = vsel %vm337, %v122, 0
    %v354 = vsel %vm337, %v123, 0
    %356 = vmatprep.subr.mxu0 0.0
    %357 = vmatpush1.msra.mxu0 %v331
    %358 = vmatprep.subr.mxu0 0.0
    %359 = vmatpush1.msra.mxu0 %v332
    %360 = vmatprep.subr.mxu0 0.0
    %361 = vmatpush1.msra.mxu0 %v333
    %362 = vmatprep.subr.mxu0 0.0
    %363 = vmatpush1.msra.mxu0 %v334
    %364 = vmatprep.subr.mxu0 0.0
    %365 = vmatpush1.msra.mxu0 %v335
    %366 = vmatprep.subr.mxu0 0.0
    %367 = vmatpush1.msra.mxu0 %v336
    %368 = vmatprep.subr.mxu0 0.0
    %369 = vmatpush1.msra.mxu0 0.0
    %370 = vmatprep.subr.mxu0 0.0
    %371 = vmatpush1.msra.mxu0 0.0
    %372 = vmatprep.subr.mxu0 0.0
    %373 = vmatpush1.msra.mxu0 0.0
    %374 = vmatprep.subr.mxu0 0.0
    %375 = vmatpush1.msra.mxu0 0.0
    %376 = vmatprep.subr.mxu0 0.0
    %377 = vmatpush1.msra.mxu0 0.0
    %378 = vmatprep.subr.mxu0 0.0
    %379 = vmatpush1.msra.mxu0 0.0
    %380 = vmatprep.subr.mxu0 0.0
    %381 = vmatpush1.msra.mxu0 0.0
    %382 = vmatprep.subr.mxu0 0.0
    %383 = vmatpush1.msra.mxu0 0.0
    %384 = vmatprep.subr.mxu0 0.0
    %385 = vmatpush1.msra.mxu0 0.0
    %386 = vmatprep.subr.mxu0 0.0
    %387 = vmatpush1.msra.mxu0 0.0
    %388 = vmatprep.subr.mxu0 0.0
    %389 = vmatpush1.msra.mxu0 0.0
    %390 = vmatprep.subr.mxu0 0.0
    %391 = vmatpush1.msra.mxu0 0.0
    %392 = vmatprep.subr.mxu0 0.0
    %393 = vmatpush1.msra.mxu0 0.0
    %394 = vmatprep.subr.mxu0 0.0
    %395 = vmatpush1.msra.mxu0 0.0
    %396 = vmatprep.subr.mxu0 0.0
    %397 = vmatpush1.msra.mxu0 0.0
    %398 = vmatprep.subr.mxu0 0.0
    %399 = vmatpush1.msra.mxu0 0.0
    %400 = vmatprep.subr.mxu0 0.0
    %401 = vmatpush1.msra.mxu0 0.0
    %402 = vmatprep.subr.mxu0 0.0
    %403 = vmatpush1.msra.mxu0 0.0
    %404 = vmatprep.subr.mxu0 0.0
    %405 = vmatpush1.msra.mxu0 0.0
    %406 = vmatprep.subr.mxu0 0.0
    %407 = vmatpush1.msra.mxu0 0.0
    %408 = vmatprep.subr.mxu0 0.0
    %409 = vmatpush1.msra.mxu0 0.0
    %410 = vmatprep.subr.mxu0 0.0
    %411 = vmatpush1.msra.mxu0 0.0
    %412 = vmatprep.subr.mxu0 0.0
    %413 = vmatpush1.msra.mxu0 0.0
    %414 = vmatprep.subr.mxu0 0.0
    %415 = vmatpush1.msra.mxu0 0.0
    %416 = vmatprep.subr.mxu0 0.0
    %417 = vmatpush1.msra.mxu0 0.0
    %418 = vmatprep.subr.mxu0 0.0
    %419 = vmatpush1.msra.mxu0 0.0
    %420 = vmatprep.mubr.f32.mxu0 0.0
    %421 = vmatmul.mubr.f32.gmra.mrb[0].mxu0 %v339
    %v422 = vpop.f32.mrb[0].mxu0
    %v423 = vadd.f32 0.0, %v422
    %v424 = vpop.f32.mrb[0].mxu0
    %425 = vmatprep.mubr.f32.mxu0 0.0
    %426 = vmatmul.mubr.f32.gmra.mrb[0].mxu0 %v342
    %v427 = vpop.f32.mrb[0].mxu0
    %v428 = vadd.f32 0.0, %v427
    %v429 = vpop.f32.mrb[0].mxu0
    %430 = vmatprep.mubr.f32.mxu0 0.0
    %431 = vmatmul.mubr.f32.gmra.mrb[0].mxu0 %v345
    %v432 = vpop.f32.mrb[0].mxu0
    %v433 = vadd.f32 0.0, %v432
    %v434 = vpop.f32.mrb[0].mxu0
    %435 = vmatprep.mubr.f32.mxu0 0.0
    %436 = vmatmul.mubr.f32.gmra.mrb[0].mxu0 %v348
    %v437 = vpop.f32.mrb[0].mxu0
    %v438 = vadd.f32 0.0, %v437
    %v439 = vpop.f32.mrb[0].mxu0
    %440 = vmatprep.mubr.f32.mxu0 0.0
    %441 = vmatmul.mubr.f32.gmra.mrb[0].mxu0 %v351
    %v442 = vpop.f32.mrb[0].mxu0
    %v443 = vadd.f32 0.0, %v442
    %v444 = vpop.f32.mrb[0].mxu0
    %445 = vmatprep.mubr.f32.mxu0 0.0
    %446 = vmatmul.mubr.f32.gmra.mrb[0].mxu0 %v354
    %v447 = vpop.f32.mrb[0].mxu0
    %v448 = vadd.f32 0.0, %v447
    %v449 = vpop.f32.mrb[0].mxu0
    %450 = vdwg.mxu0
    %451 = vmatprep.subr.mxu0 0.0
    %452 = vmatpush1.msra.mxu0 %v124
    %453 = vmatprep.subr.mxu0 0.0
    %454 = vmatpush1.msra.mxu0 %v125
    %455 = vmatprep.subr.mxu0 0.0
    %456 = vmatpush1.msra.mxu0 %v126
    %457 = vmatprep.subr.mxu0 0.0
    %458 = vmatpush1.msra.mxu0 %v127
    %459 = vmatprep.subr.mxu0 0.0
    %460 = vmatpush1.msra.mxu0 %v128
    %461 = vmatprep.subr.mxu0 0.0
    %462 = vmatpush1.msra.mxu0 %v129
    %463 = vmatprep.subr.mxu0 0.0
    %464 = vmatpush1.msra.mxu0 %v130
    %465 = vmatprep.subr.mxu0 0.0
    %466 = vmatpush1.msra.mxu0 %v131
    %467 = vmatprep.subr.mxu0 0.0
    %468 = vmatpush1.msra.mxu0 %v132
    %469 = vmatprep.subr.mxu0 0.0
    %470 = vmatpush1.msra.mxu0 %v133
    %471 = vmatprep.subr.mxu0 0.0
    %472 = vmatpush1.msra.mxu0 %v134
    %473 = vmatprep.subr.mxu0 0.0
    %474 = vmatpush1.msra.mxu0 %v135
    %475 = vmatprep.subr.mxu0 0.0
    %476 = vmatpush1.msra.mxu0 %v136
    %477 = vmatprep.subr.mxu0 0.0
    %478 = vmatpush1.msra.mxu0 %v137
    %479 = vmatprep.subr.mxu0 0.0
    %480 = vmatpush1.msra.mxu0 %v138
    %481 = vmatprep.subr.mxu0 0.0
    %482 = vmatpush1.msra.mxu0 %v139
    %483 = vmatprep.subr.mxu0 0.0
    %484 = vmatpush1.msra.mxu0 0.0
    %485 = vmatprep.subr.mxu0 0.0
    %486 = vmatpush1.msra.mxu0 0.0
    %487 = vmatprep.subr.mxu0 0.0
    %488 = vmatpush1.msra.mxu0 0.0
    %489 = vmatprep.subr.mxu0 0.0
    %490 = vmatpush1.msra.mxu0 0.0
    %491 = vmatprep.subr.mxu0 0.0
    %492 = vmatpush1.msra.mxu0 0.0
    %493 = vmatprep.subr.mxu0 0.0
    %494 = vmatpush1.msra.mxu0 0.0
    %495 = vmatprep.subr.mxu0 0.0
    %496 = vmatpush1.msra.mxu0 0.0
    %497 = vmatprep.subr.mxu0 0.0
    %498 = vmatpush1.msra.mxu0 0.0
    %499 = vmatprep.subr.mxu0 0.0
    %500 = vmatpush1.msra.mxu0 0.0
    %501 = vmatprep.subr.mxu0 0.0
    %502 = vmatpush1.msra.mxu0 0.0
    %503 = vmatprep.subr.mxu0 0.0
    %504 = vmatpush1.msra.mxu0 0.0
    %505 = vmatprep.subr.mxu0 0.0
    %506 = vmatpush1.msra.mxu0 0.0
    %507 = vmatprep.subr.mxu0 0.0
    %508 = vmatpush1.msra.mxu0 0.0
    %509 = vmatprep.subr.mxu0 0.0
    %510 = vmatpush1.msra.mxu0 0.0
    %511 = vmatprep.subr.mxu0 0.0
    %512 = vmatpush1.msra.mxu0 0.0
    %513 = vmatprep.subr.mxu0 0.0
    %514 = vmatpush1.msra.mxu0 0.0
    %515 = vmatprep.mubr.f32.mxu0 0.0
    %516 = vmatmul.mubr.f32.gmra.mrb[0].mxu0 %v423
    %v517 = vpop.f32.mrb[0].mxu0
    %v518 = vadd.f32 0.0, %v517
    %v519 = vpop.f32.mrb[0].mxu0
    %520 = vmatprep.mubr.f32.mxu0 0.0
    %521 = vmatmul.mubr.f32.gmra.mrb[0].mxu0 %v428
    %v522 = vpop.f32.mrb[0].mxu0
    %v523 = vadd.f32 0.0, %v522
    %v524 = vpop.f32.mrb[0].mxu0
    %525 = vmatprep.mubr.f32.mxu0 0.0
    %526 = vmatmul.mubr.f32.gmra.mrb[0].mxu0 %v433
    %v527 = vpop.f32.mrb[0].mxu0
    %v528 = vadd.f32 0.0, %v527
    %v529 = vpop.f32.mrb[0].mxu0
    %530 = vmatprep.mubr.f32.mxu0 0.0
    %531 = vmatmul.mubr.f32.gmra.mrb[0].mxu0 %v438
    %v532 = vpop.f32.mrb[0].mxu0
    %v533 = vadd.f32 0.0, %v532
    %v534 = vpop.f32.mrb[0].mxu0
    %535 = vmatprep.mubr.f32.mxu0 0.0
    %536 = vmatmul.mubr.f32.gmra.mrb[0].mxu0 %v443
    %v537 = vpop.f32.mrb[0].mxu0
    %v538 = vadd.f32 0.0, %v537
    %v539 = vpop.f32.mrb[0].mxu0
    %540 = vmatprep.mubr.f32.mxu0 0.0
    %541 = vmatmul.mubr.f32.gmra.mrb[0].mxu0 %v448
    %v542 = vpop.f32.mrb[0].mxu0
    %v543 = vadd.f32 0.0, %v542
    %v544 = vpop.f32.mrb[0].mxu0
    %545 = vdwg.mxu0
    %v546 = vmax.f32 %v518, 1e-20
    %v547 = vmax.f32 %v523, 1e-20
    %v548 = vmax.f32 %v528, 1e-20
    %v549 = vmax.f32 %v533, 1e-20
    %v550 = vrsqrt.pop %v546
    %v551 = vrsqrt.pop %v547
    %v552 = vmul.f32 %v538, %v550
    %v553 = vmul.f32 %v543, %v551
    %v554 = vrsqrt.pop %v548
    %v555 = vrsqrt.pop %v549
    %v556 = vmul.f32 %v552, %v554
    %v557 = vmul.f32 %v553, %v555
    %v558 = vmax.f32 %v556, -1.0
    %v559 = vmax.f32 %v557, -1.0
    %v560 = vsub.f32 1.0, %v558
    %v561 = vsub.f32 1.0, %v559
    %vm562 = vcmp.gt.f32.partialorder %v560, 0.5
    %vm563 = vcmp.gt.f32.partialorder %v561, 0.5
    %v564 = vsel %vm562, %v560, 0.0
    %v565 = vsel %vm563, %v561, 0.0
    %v566 = vld [vmem:[#allocation2] sm:$0xff]
    %v567 = vld [vmem:[#allocation2 + $0x8] sm:$0xff]
    %v568 = vadd.f32 %v566, %v560
    %v569 = vadd.f32 %v567, %v561
    %570 = vst [vmem:[#allocation2] sm:$0xff] %v568
    %571 = vst [vmem:[#allocation2 + $0x8] sm:$0xff] %v569
    %v572 = vld [vmem:[#allocation3] sm:$0xff]
    %v573 = vld [vmem:[#allocation3 + $0x8] sm:$0xff]
    %v574 = vadd.f32 %v572, %v564
    %v575 = vadd.f32 %v573, %v565
    %576 = vst [vmem:[#allocation3] sm:$0xff] %v574
    %577 = vst [vmem:[#allocation3 + $0x8] sm:$0xff] %v575
    // Predicated region
    $region46: #{tpu_custom_call.1} parent=1 // pred_check
      %p578 = pneg %p102
    $region47: #{tpu_custom_call.1} parent=1 // pred_check_branch
      %580 = sbr.rel (%p578) target = $region49
    $region48: #{tpu_custom_call.1} parent=1 // pred_region
      %v581 = vld [vmem:[#allocation3] sm:$0xff]
      %v582 = vld [vmem:[#allocation3 + $0x8] sm:$0xff]
      %v583 = vadd.f32 %v581, %v582
      %584 = vadd.xlane.f32.xlu0 %v583
      %v585 = vpop.xlane.xlu0 %584
      %v586 = vrot.slane %v585, 4
      %v587 = vadd.f32 %v585, %v586
      %v588 = vrot.slane %v587, 2
      %v589 = vadd.f32 %v587, %v588
      %v590 = vrot.slane %v589, 1
      %v591 = vadd.f32 %v589, %v590
      %s592 = vtos %v591
      %v593 = vstv %s592
      %vm594 = vcmask 0
      %595 = vst.msk [vmem:[#allocation13] sm:$0x1] %vm594, %v593
      %v596 = vld [vmem:[#allocation2] sm:$0xff]
      %v597 = vld [vmem:[#allocation2 + $0x8] sm:$0xff]
      %v598 = vadd.f32 %v596, %v597
      %599 = vadd.xlane.f32.xlu0 %v598
      %v600 = vpop.xlane.xlu0 %599
      %v601 = vrot.slane %v600, 4
      %v602 = vadd.f32 %v600, %v601
      %v603 = vrot.slane %v602, 2
      %v604 = vadd.f32 %v602, %v603
      %v605 = vrot.slane %v604, 1
      %v606 = vadd.f32 %v604, %v605
      %s607 = vtos %v606
      %v608 = vstv %s607
      %609 = vst.msk [vmem:[#allocation14] sm:$0x1] %vm594, %v608
    $region49: #{tpu_custom_call.1} parent=1 // pred_fallthru
      _
    // Predicated region
    $region50: #{tpu_custom_call.1} parent=1 // pred_check
      _
    $region51: #{tpu_custom_call.1} parent=1 // pred_check_branch
      %611 = sbr.rel (0) target = $region53
    $region52: #{tpu_custom_call.1} parent=1 // pred_region
      %s613 = ssub.s32 16, 16
      %614 = vsyncadd [#allocation6], %s613
      %s616 = sshll.u32 [#allocation13], 4
      %s617 = int_to_ptr.vmem [resolvable:$true] %s616
      %619 = dma.vmem_to_hbm [thread:$0]  %s617, 16, %s5, [#allocation6]
    $region53: #{tpu_custom_call.1} parent=1 // pred_fallthru
      _
    // Predicated region
    $region54: #{tpu_custom_call.1} parent=1 // pred_check
      _
    $region55: #{tpu_custom_call.1} parent=1 // pred_check_branch
      %621 = sbr.rel (0) target = $region57
    $region56: #{tpu_custom_call.1} parent=1 // pred_region
      %s623 = ssub.s32 16, 16
      %624 = vsyncadd [#allocation15], %s623
      %s626 = sshll.u32 [#allocation14], 4
      %s627 = int_to_ptr.vmem [resolvable:$true] %s626
      %629 = dma.vmem_to_hbm [thread:$0]  %s627, 16, %s6, [#allocation15]
    $region57: #{tpu_custom_call.1} parent=1 // pred_fallthru
      _
    // Predicated region
    $region58: #{tpu_custom_call.1} parent=1 // pred_check
      _
    $region59: #{tpu_custom_call.1} parent=1 // pred_check_branch
      %631 = sbr.rel (0) target = $region61
    $region60: #{tpu_custom_call.1} parent=1 // pred_region
      %632 = dma.done [#allocation6], 16
    $region61: #{tpu_custom_call.1} parent=1 // pred_fallthru
      _
    // Predicated region
    $region62: #{tpu_custom_call.1} parent=1 // pred_check
      _
    $region63: #{tpu_custom_call.1} parent=1 // pred_check_branch
      %634 = sbr.rel (0) target = $region65
    $region64: #{tpu_custom_call.1} parent=1 // pred_region
      %635 = dma.done [#allocation15], 16
    $region65: #{tpu_custom_call.1} parent=1 // pred_fallthru
      _
    %636 = vsyncpa [#allocation5], 1
    %637 = vsyncpa [#allocation8], 1
    %638 = vsyncpa [#allocation11], 1
    %639 = vsyncpa [#allocation6], 1
    %640 = vsyncpa [#allocation15], 1

</llo_original>
